<compile_context>
chip_gen: v7x
topology: tpu7x:2x2x1
jax: 0.10.0
libtpu: 0.0.40
codegen_flags: <defaults>
</compile_context>

<pallas_src>
import jax
import jax.numpy as jnp
from jax.experimental import pallas as pl
from jax.experimental.pallas import tpu as pltpu

_RRELU_SLOPE = 0.5 * (1.0 / 8.0 + 1.0 / 3.0)  # = 11/48 (F.rrelu eval-mode slope)
_LANES = 128
_SUBLANES = 16  # bf16-safe sublane multiple (also satisfies f32's 8)


def _round_up(n, m):
    return int(pl.cdiv(int(n), m)) * m


def _pad_to(a, rows, cols):
    pr, pc = rows - a.shape[0], cols - a.shape[1]
    if pr == 0 and pc == 0:
        return a
    return jnp.pad(a, ((0, pr), (0, pc)))


def mlp_kernel(x_ref, w1_ref, b1_ref, w2_ref, b2_ref, w3_ref, b3_ref, o_ref):
    """Fused ((x @ W1 + b1) @ W2 + b2) @ W3 + b3 -> rrelu on one batch tile."""
    x = x_ref[...].astype(jnp.bfloat16)  # f32 read from HBM, VPU cast to bf16
    h1 = jnp.dot(x, w1_ref[...], preferred_element_type=jnp.float32) + b1_ref[...]
    h2 = jnp.dot(h1.astype(jnp.bfloat16), w2_ref[...],
                 preferred_element_type=jnp.float32) + b2_ref[...]
    h3 = jnp.dot(h2.astype(jnp.bfloat16), w3_ref[...],
                 preferred_element_type=jnp.float32) + b3_ref[...]
    # F.rrelu (training=False): leaky relu with slope (lower + upper) / 2, in f32.
    o_ref[...] = jnp.where(h3 >= 0, h3, _RRELU_SLOPE * h3).astype(o_ref.dtype)


def prepare_params(params):
    """One-time parameter prep: lane-pad hidden dims to 128, cast weights to bf16.

    params = (w1, b1, w2, b2, w3, b3) with weights stored (in, out) and
    biases (1, out). The output dim of w3/b3 is NOT padded — the kernel writes
    the true-width output directly.
    """
    w1, b1, w2, b2, w3, b3 = params
    in_dim = w1.shape[0]
    h1p = _round_up(w1.shape[1], _LANES)
    h2p = _round_up(w2.shape[1], _LANES)
    out_dim = w3.shape[1]

    w1p = _pad_to(w1, in_dim, h1p).astype(jnp.bfloat16)
    b1p = _pad_to(b1, 1, h1p).astype(jnp.float32)          # biases stay f32
    w2p = _pad_to(w2, h1p, h2p).astype(jnp.bfloat16)
    b2p = _pad_to(b2, 1, h2p).astype(jnp.float32)
    w3p = _pad_to(w3, h2p, out_dim).astype(jnp.bfloat16)   # out dim unpadded
    b3p = b3.astype(jnp.float32)
    return (w1p, b1p, w2p, b2p, w3p, b3p)


def neuralnetwork_forward(x, prepared_params, *, block_batch=4096):
    """x: (batch, in_dim) f32; prepared_params from prepare_params()."""
    w1p, b1p, w2p, b2p, w3p, b3p = prepared_params
    batch, in_dim = x.shape
    h1p = w1p.shape[1]
    h2p = w2p.shape[1]
    out_dim = w3p.shape[1]

    # Batch tile: as large as block_batch allows, but keep >= 2 grid steps for
    # large batches (v7x megacore), rounded to 16 sublanes. Weights/biases stay
    # resident in VMEM across all grid steps (index_map -> (0, 0)).
    tb = _round_up(max(_SUBLANES, min(block_batch, pl.cdiv(batch, 2))), _SUBLANES)
    grid = (int(pl.cdiv(batch, tb)),)  # ragged last tile handled by Pallas masking

    flops = 2 * batch * (in_dim * h1p + h1p * h2p + h2p * out_dim)
    bytes_accessed = (
        batch * in_dim * 4                             # x read (f32, once)
        + (w1p.size + w2p.size + w3p.size) * 2         # weights (bf16)
        + (b1p.size + b2p.size + b3p.size) * 4         # biases (f32)
        + batch * out_dim * 4                          # true-width f32 output
    )

    out = pl.pallas_call(
        mlp_kernel,
        out_shape=jax.ShapeDtypeStruct((batch, out_dim), jnp.float32),
        grid=grid,
        in_specs=[
            pl.BlockSpec((tb, in_dim), lambda i: (i, 0)),    # x tile, pipelined
            pl.BlockSpec((in_dim, h1p), lambda i: (0, 0)),   # resident weights
            pl.BlockSpec((1, h1p), lambda i: (0, 0)),
            pl.BlockSpec((h1p, h2p), lambda i: (0, 0)),
            pl.BlockSpec((1, h2p), lambda i: (0, 0)),
            pl.BlockSpec((h2p, out_dim), lambda i: (0, 0)),
            pl.BlockSpec((1, out_dim), lambda i: (0, 0)),
        ],
        out_specs=pl.BlockSpec((tb, out_dim), lambda i: (i, 0)),
        compiler_params=pltpu.CompilerParams(
            dimension_semantics=("parallel",)),
        cost_estimate=pl.CostEstimate(
            flops=int(flops), transcendentals=0,
            bytes_accessed=int(bytes_accessed)),
    )(x, w1p, b1p, w2p, b2p, w3p, b3p)

    return out  # already the exact (batch, out_dim) result — no slicing needed


def init_linear(key, in_features, out_features):
    """PyTorch nn.Linear-style init: U(-1/sqrt(in), 1/sqrt(in))."""
    kw, kb = jax.random.split(key)
    bound = 1.0 / jnp.sqrt(jnp.float32(in_features))
    # stored as (in, out) so kernel does x @ W
    w = jax.random.uniform(kw, (in_features, out_features), jnp.float32, -bound, bound)
    b = jax.random.uniform(kb, (1, out_features), jnp.float32, -bound, bound)
    return w, b


def reference_forward(x, params):
    """Pure-f32 reference of the PyTorch module's forward (eval-mode rrelu)."""
    w1, b1, w2, b2, w3, b3 = params
    h = x @ w1 + b1
    h = h @ w2 + b2
    h = h @ w3 + b3
    return jnp.where(h >= 0, h, _RRELU_SLOPE * h)


if __name__ == "__main__":
    # Small shapes consistent with the module: in_dim=32, n_hidden_1=64,
    # n_hidden_2=64, out_dim=16. batch=40 with block_batch=32 exercises a
    # 2-step grid AND a ragged (8-row) last tile.
    batch, in_dim, n_hidden_1, n_hidden_2, out_dim = 40, 32, 64, 64, 16

    key = jax.random.PRNGKey(0)
    kx, k1, k2, k3 = jax.random.split(key, 4)

    x = jax.random.normal(kx, (batch, in_dim), jnp.float32)
    w1, b1 = init_linear(k1, in_dim, n_hidden_1)
    w2, b2 = init_linear(k2, n_hidden_1, n_hidden_2)
    w3, b3 = init_linear(k3, n_hidden_2, out_dim)
    params = (w1, b1, w2, b2, w3, b3)

    prepared = prepare_params(params)  # one-time pad + bf16 cast of weights
    out = neuralnetwork_forward(x, prepared, block_batch=32)
    out = jax.block_until_ready(out)

    ref = reference_forward(x, params)
    assert out.shape == (batch, out_dim)
    # bf16 matmul operands with f32 accumulation -> loosened tolerance vs f32 ref.
    assert jnp.allclose(out, ref, atol=2e-2, rtol=2e-2), "mismatch vs f32 reference"

    print("KERNEL_OK")
</pallas_src>

<mosaic_0001>
module attributes {stable_mosaic.version = 11 : i64} {
  func.func @mlp_kernel(%arg0: i32, %arg1: memref<32x32xf32, #tpu.memory_space<vmem>>, %arg2: memref<32x128xbf16, #tpu.memory_space<vmem>>, %arg3: memref<1x128xf32, #tpu.memory_space<vmem>>, %arg4: memref<128x128xbf16, #tpu.memory_space<vmem>>, %arg5: memref<1x128xf32, #tpu.memory_space<vmem>>, %arg6: memref<128x16xbf16, #tpu.memory_space<vmem>>, %arg7: memref<1x16xf32, #tpu.memory_space<vmem>>, %arg8: memref<32x16xf32, #tpu.memory_space<vmem>>) attributes {dimension_semantics = [#tpu.dimension_semantics<parallel>], iteration_bounds = array<i64: 2>, scalar_prefetch = 0 : i64, scratch_operands = 0 : i64, tpu.core_type = #tpu.core_type<tc>, window_params = [{transform_indices = @transform_0, window_bounds = array<i64: 32, 32>}, {pipeline_mode = #tpu.pipeline_mode<synchronous>, transform_indices = @transform_1, window_bounds = array<i64: 32, 128>}, {pipeline_mode = #tpu.pipeline_mode<synchronous>, transform_indices = @transform_2, window_bounds = array<i64: 1, 128>}, {pipeline_mode = #tpu.pipeline_mode<synchronous>, transform_indices = @transform_3, window_bounds = array<i64: 128, 128>}, {pipeline_mode = #tpu.pipeline_mode<synchronous>, transform_indices = @transform_4, window_bounds = array<i64: 1, 128>}, {pipeline_mode = #tpu.pipeline_mode<synchronous>, transform_indices = @transform_5, window_bounds = array<i64: 128, 16>}, {pipeline_mode = #tpu.pipeline_mode<synchronous>, transform_indices = @transform_6, window_bounds = array<i64: 1, 16>}, {transform_indices = @transform_7, window_bounds = array<i64: 32, 16>}]} {
    %c0 = arith.constant 0 : index
    %c0_0 = arith.constant 0 : index
    %0 = vector.load %arg1[%c0, %c0_0] : memref<32x32xf32, #tpu.memory_space<vmem>>, vector<32x32xf32>
    %1 = arith.truncf %0 : vector<32x32xf32> to vector<32x32xbf16>
    %c0_1 = arith.constant 0 : index
    %c0_2 = arith.constant 0 : index
    %2 = vector.load %arg2[%c0_1, %c0_2] : memref<32x128xbf16, #tpu.memory_space<vmem>>, vector<32x128xbf16>
    %cst = arith.constant dense<0.000000e+00> : vector<32x128xf32>
    %3 = tpu.matmul %1, %2, %cst {dimension_numbers = #tpu.dot_dimension_numbers<[1], [0], [0], [1], [0, 0, 1, 1], [], []>} : vector<32x32xbf16>, vector<32x128xbf16>, vector<32x128xf32> -> vector<32x128xf32>
    %c0_3 = arith.constant 0 : index
    %c0_4 = arith.constant 0 : index
    %4 = vector.load %arg3[%c0_3, %c0_4] : memref<1x128xf32, #tpu.memory_space<vmem>>, vector<1x128xf32>
    %5 = vector.broadcast %4 : vector<1x128xf32> to vector<32x128xf32>
    %6 = arith.addf %3, %5 : vector<32x128xf32>
    %7 = arith.truncf %6 : vector<32x128xf32> to vector<32x128xbf16>
    %c0_5 = arith.constant 0 : index
    %c0_6 = arith.constant 0 : index
    %8 = vector.load %arg4[%c0_5, %c0_6] : memref<128x128xbf16, #tpu.memory_space<vmem>>, vector<128x128xbf16>
    %cst_7 = arith.constant dense<0.000000e+00> : vector<32x128xf32>
    %9 = tpu.matmul %7, %8, %cst_7 {dimension_numbers = #tpu.dot_dimension_numbers<[1], [0], [0], [1], [0, 0, 1, 1], [], []>} : vector<32x128xbf16>, vector<128x128xbf16>, vector<32x128xf32> -> vector<32x128xf32>
    %c0_8 = arith.constant 0 : index
    %c0_9 = arith.constant 0 : index
    %10 = vector.load %arg5[%c0_8, %c0_9] : memref<1x128xf32, #tpu.memory_space<vmem>>, vector<1x128xf32>
    %11 = vector.broadcast %10 : vector<1x128xf32> to vector<32x128xf32>
    %12 = arith.addf %9, %11 : vector<32x128xf32>
    %13 = arith.truncf %12 : vector<32x128xf32> to vector<32x128xbf16>
    %c0_10 = arith.constant 0 : index
    %c0_11 = arith.constant 0 : index
    %14 = vector.load %arg6[%c0_10, %c0_11] : memref<128x16xbf16, #tpu.memory_space<vmem>>, vector<128x16xbf16>
    %cst_12 = arith.constant dense<0.000000e+00> : vector<32x16xf32>
    %15 = tpu.matmul %13, %14, %cst_12 {dimension_numbers = #tpu.dot_dimension_numbers<[1], [0], [0], [1], [0, 0, 1, 1], [], []>} : vector<32x128xbf16>, vector<128x16xbf16>, vector<32x16xf32> -> vector<32x16xf32>
    %c0_13 = arith.constant 0 : index
    %c0_14 = arith.constant 0 : index
    %16 = vector.load %arg7[%c0_13, %c0_14] : memref<1x16xf32, #tpu.memory_space<vmem>>, vector<1x16xf32>
    %17 = vector.broadcast %16 : vector<1x16xf32> to vector<32x16xf32>
    %18 = arith.addf %15, %17 : vector<32x16xf32>
    %cst_15 = arith.constant 0.000000e+00 : f32
    %19 = vector.broadcast %cst_15 : f32 to vector<32x16xf32>
    %20 = arith.cmpf oge, %18, %19 : vector<32x16xf32>
    %cst_16 = arith.constant 0.229166672 : f32
    %21 = vector.broadcast %cst_16 : f32 to vector<32x16xf32>
    %22 = arith.mulf %21, %18 : vector<32x16xf32>
    %23 = arith.select %20, %18, %22 : vector<32x16xi1>, vector<32x16xf32>
    %c0_17 = arith.constant 0 : index
    %c0_18 = arith.constant 0 : index
    %24 = vector.load %arg8[%c0_17, %c0_18] : memref<32x16xf32, #tpu.memory_space<vmem>>, vector<32x16xf32>
    tpu.vector_store %arg8[%c0_17, %c0_18], %23 {strides = array<i32>} : memref<32x16xf32, #tpu.memory_space<vmem>>, vector<32x16xf32>,
    return
  }
  func.func @transform_0(%arg0: i32) -> (i32, i32) {
    %c0_i32 = arith.constant 0 : i32
    %c0_i32_0 = arith.constant 0 : i32
    return %arg0, %c0_i32 : i32, i32
  }
  func.func @transform_1(%arg0: i32) -> (i32, i32) {
    %c0_i32 = arith.constant 0 : i32
    %c0_i32_0 = arith.constant 0 : i32
    %c0_i32_1 = arith.constant 0 : i32
    return %c0_i32, %c0_i32_0 : i32, i32
  }
  func.func @transform_2(%arg0: i32) -> (i32, i32) {
    %c0_i32 = arith.constant 0 : i32
    %c0_i32_0 = arith.constant 0 : i32
    %c0_i32_1 = arith.constant 0 : i32
    return %c0_i32, %c0_i32_0 : i32, i32
  }
  func.func @transform_3(%arg0: i32) -> (i32, i32) {
    %c0_i32 = arith.constant 0 : i32
    %c0_i32_0 = arith.constant 0 : i32
    %c0_i32_1 = arith.constant 0 : i32
    return %c0_i32, %c0_i32_0 : i32, i32
  }
  func.func @transform_4(%arg0: i32) -> (i32, i32) {
    %c0_i32 = arith.constant 0 : i32
    %c0_i32_0 = arith.constant 0 : i32
    %c0_i32_1 = arith.constant 0 : i32
    return %c0_i32, %c0_i32_0 : i32, i32
  }
  func.func @transform_5(%arg0: i32) -> (i32, i32) {
    %c0_i32 = arith.constant 0 : i32
    %c0_i32_0 = arith.constant 0 : i32
    %c0_i32_1 = arith.constant 0 : i32
    return %c0_i32, %c0_i32_0 : i32, i32
  }
  func.func @transform_6(%arg0: i32) -> (i32, i32) {
    %c0_i32 = arith.constant 0 : i32
    %c0_i32_0 = arith.constant 0 : i32
    %c0_i32_1 = arith.constant 0 : i32
    return %c0_i32, %c0_i32_0 : i32, i32
  }
  func.func @transform_7(%arg0: i32) -> (i32, i32) {
    %c0_i32 = arith.constant 0 : i32
    %c0_i32_0 = arith.constant 0 : i32
    return %arg0, %c0_i32 : i32, i32
  }
}

</mosaic_0001>

<llo_original>
// kernel: tpu_custom_call.1
$region0: #{tpu_custom_call.1}
  #allocation0 [shape = 'u32[]', space=smem, size = 0x4, offset = 0x4, fixed_abs, tag = 'smem constant byte address 0x4 - core index']
  #allocation1 [shape = 'u32[144,128]{1,0:T(1,128)}', space=vmem, size = 0x12000, scoped, tag = 'internal scratch']
  %s0 = inlined_call_operand.vmem [shape: f32[40,32], index: 0, kind: input, shape index: {}]
  %s1 = inlined_call_operand.vmem [shape: bf16[32,128], index: 1, kind: input, shape index: {}]
  %s2 = inlined_call_operand.vmem [shape: f32[1,128], index: 2, kind: input, shape index: {}]
  %s3 = inlined_call_operand.vmem [shape: bf16[128,128], index: 3, kind: input, shape index: {}]
  %s4 = inlined_call_operand.vmem [shape: f32[1,128], index: 4, kind: input, shape index: {}]
  %s5 = inlined_call_operand.vmem [shape: bf16[128,16], index: 5, kind: input, shape index: {}]
  %s6 = inlined_call_operand.vmem [shape: f32[1,16], index: 6, kind: input, shape index: {}]
  %s7 = inlined_call_operand.vmem [shape: f32[40,16], index: 7, kind: output, shape index: {}]
  %s8 = sld [smem:[#allocation0]]
  $region109: #{tpu_custom_call.1} parent=0
    _
  %s10 = ssub.s32 1, %s8
  %s11 = scalar_select 0, %s10, %s8
  $region1: #{tpu_custom_call.1} parent=0
    #allocation2 [shape = 'u8[32768]{0}', space=vmem, size = 0x8000, scoped, tag = 'output window, operand 0']
    loop: start=0, step=1, limit=4
    $region2: #{tpu_custom_call.1} parent=1 // loop_pre_header
      _
    $region3: #{tpu_custom_call.1} parent=1 // loop_header
      %s13 = sphi 0, %s17
      %p14 = scmp.ge.s32.totalorder %s13, 4
      %s23 = sphi 0, %s25
      %s26 = sphi 0, %s23
      %s27 = sphi 0, %s26
      %s43 = sphi 0, %s27
      %s47 = sphi 0, %s47
      %s49 = sphi 0, %s47
      %s50 = sphi 0, %s49
      %s64 = sphi 0, %s50
      %s68 = sphi 0, %s68
      %s70 = sphi 0, %s68
      %s71 = sphi 0, %s70
      %s85 = sphi 0, %s71
      %s89 = sphi 0, %s89
      %s91 = sphi 0, %s89
      %s92 = sphi 0, %s91
      %s106 = sphi 0, %s92
      %s110 = sphi 0, %s110
      %s112 = sphi 0, %s110
      %s113 = sphi 0, %s112
      %s127 = sphi 0, %s113
      %s131 = sphi 0, %s131
      %s133 = sphi 0, %s131
      %s134 = sphi 0, %s133
      %s148 = sphi 0, %s134
      %s152 = sphi 0, %s152
      %s154 = sphi 0, %s152
      %s155 = sphi 0, %s154
      %s169 = sphi 0, %s155
      %s175 = sphi 0, %s177
      %s178 = sphi 0, %s175
      %s179 = sphi 0, %s178
      %s195 = sphi 0, %s179
    $region4: #{tpu_custom_call.1} parent=1 // loop_header_branch
      %16 = sbr.rel (%p14) target = $region8
    $region5: #{tpu_custom_call.1} parent=1 // loop_body
      %s18 = ssub.s32 %s13, 1
      %s19 = ssub.s32 %s13, 2
      %s20 = sadd.s32 %s13, 1
      %s21 = ssub.s32 %s13, %s20
      %p22 = scmp.eq.s32.totalorder %s21, 0
      %s24 = sadd.s32 %s23, 1
      %s25 = scalar_select %p22, %s23, %s24
      %p28 = pneg %p22
      %p29 = scmp.eq.s32.totalorder %s13, 1
      %p30 = por %p28, %p29
      %p31 = scmp.ne.s32.totalorder %s23, %s26
      %p32 = scmp.eq.s32.totalorder %s13, 0
      %p33 = por %p31, %p32
      %p34 = scmp.ne.s32.totalorder %s23, %s26
      %p35 = scmp.eq.s32.totalorder %s18, 1
      %p36 = por %p34, %p35
      %p37 = scmp.ne.s32.totalorder %s26, %s27
      %p38 = scmp.eq.s32.totalorder %s18, 0
      %p39 = por %p37, %p38
      %p40 = scmp.ne.s32.totalorder %s26, %s27
      %p41 = scmp.eq.s32.totalorder %s19, 1
      %p42 = por %p40, %p41
      %p44 = scmp.ne.s32.totalorder %s27, %s43
      %p45 = scmp.eq.s32.totalorder %s19, 0
      %p46 = por %p44, %p45
      %s48 = sadd.s32 %s47, 1
      %p51 = scmp.eq.s32.totalorder %s13, 1
      %p52 = scmp.ne.s32.totalorder %s47, %s49
      %p53 = scmp.eq.s32.totalorder %s13, 0
      %p54 = por %p52, %p53
      %p55 = scmp.ne.s32.totalorder %s47, %s49
      %p56 = scmp.eq.s32.totalorder %s18, 1
      %p57 = por %p55, %p56
      %p58 = scmp.ne.s32.totalorder %s49, %s50
      %p59 = scmp.eq.s32.totalorder %s18, 0
      %p60 = por %p58, %p59
      %p61 = scmp.ne.s32.totalorder %s49, %s50
      %p62 = scmp.eq.s32.totalorder %s19, 1
      %p63 = por %p61, %p62
      %p65 = scmp.ne.s32.totalorder %s50, %s64
      %p66 = scmp.eq.s32.totalorder %s19, 0
      %p67 = por %p65, %p66
      %s69 = sadd.s32 %s68, 1
      %p72 = scmp.eq.s32.totalorder %s13, 1
      %p73 = scmp.ne.s32.totalorder %s68, %s70
      %p74 = scmp.eq.s32.totalorder %s13, 0
      %p75 = por %p73, %p74
      %p76 = scmp.ne.s32.totalorder %s68, %s70
      %p77 = scmp.eq.s32.totalorder %s18, 1
      %p78 = por %p76, %p77
      %p79 = scmp.ne.s32.totalorder %s70, %s71
      %p80 = scmp.eq.s32.totalorder %s18, 0
      %p81 = por %p79, %p80
      %p82 = scmp.ne.s32.totalorder %s70, %s71
      %p83 = scmp.eq.s32.totalorder %s19, 1
      %p84 = por %p82, %p83
      %p86 = scmp.ne.s32.totalorder %s71, %s85
      %p87 = scmp.eq.s32.totalorder %s19, 0
      %p88 = por %p86, %p87
      %s90 = sadd.s32 %s89, 1
      %p93 = scmp.eq.s32.totalorder %s13, 1
      %p94 = scmp.ne.s32.totalorder %s89, %s91
      %p95 = scmp.eq.s32.totalorder %s13, 0
      %p96 = por %p94, %p95
      %p97 = scmp.ne.s32.totalorder %s89, %s91
      %p98 = scmp.eq.s32.totalorder %s18, 1
      %p99 = por %p97, %p98
      %p100 = scmp.ne.s32.totalorder %s91, %s92
      %p101 = scmp.eq.s32.totalorder %s18, 0
      %p102 = por %p100, %p101
      %p103 = scmp.ne.s32.totalorder %s91, %s92
      %p104 = scmp.eq.s32.totalorder %s19, 1
      %p105 = por %p103, %p104
      %p107 = scmp.ne.s32.totalorder %s92, %s106
      %p108 = scmp.eq.s32.totalorder %s19, 0
      %p109 = por %p107, %p108
      %s111 = sadd.s32 %s110, 1
      %p114 = scmp.eq.s32.totalorder %s13, 1
      %p115 = scmp.ne.s32.totalorder %s110, %s112
      %p116 = scmp.eq.s32.totalorder %s13, 0
      %p117 = por %p115, %p116
      %p118 = scmp.ne.s32.totalorder %s110, %s112
      %p119 = scmp.eq.s32.totalorder %s18, 1
      %p120 = por %p118, %p119
      %p121 = scmp.ne.s32.totalorder %s112, %s113
      %p122 = scmp.eq.s32.totalorder %s18, 0
      %p123 = por %p121, %p122
      %p124 = scmp.ne.s32.totalorder %s112, %s113
      %p125 = scmp.eq.s32.totalorder %s19, 1
      %p126 = por %p124, %p125
      %p128 = scmp.ne.s32.totalorder %s113, %s127
      %p129 = scmp.eq.s32.totalorder %s19, 0
      %p130 = por %p128, %p129
      %s132 = sadd.s32 %s131, 1
      %p135 = scmp.eq.s32.totalorder %s13, 1
      %p136 = scmp.ne.s32.totalorder %s131, %s133
      %p137 = scmp.eq.s32.totalorder %s13, 0
      %p138 = por %p136, %p137
      %p139 = scmp.ne.s32.totalorder %s131, %s133
      %p140 = scmp.eq.s32.totalorder %s18, 1
      %p141 = por %p139, %p140
      %p142 = scmp.ne.s32.totalorder %s133, %s134
      %p143 = scmp.eq.s32.totalorder %s18, 0
      %p144 = por %p142, %p143
      %p145 = scmp.ne.s32.totalorder %s133, %s134
      %p146 = scmp.eq.s32.totalorder %s19, 1
      %p147 = por %p145, %p146
      %p149 = scmp.ne.s32.totalorder %s134, %s148
      %p150 = scmp.eq.s32.totalorder %s19, 0
      %p151 = por %p149, %p150
      %s153 = sadd.s32 %s152, 1
      %p156 = scmp.eq.s32.totalorder %s13, 1
      %p157 = scmp.ne.s32.totalorder %s152, %s154
      %p158 = scmp.eq.s32.totalorder %s13, 0
      %p159 = por %p157, %p158
      %p160 = scmp.ne.s32.totalorder %s152, %s154
      %p161 = scmp.eq.s32.totalorder %s18, 1
      %p162 = por %p160, %p161
      %p163 = scmp.ne.s32.totalorder %s154, %s155
      %p164 = scmp.eq.s32.totalorder %s18, 0
      %p165 = por %p163, %p164
      %p166 = scmp.ne.s32.totalorder %s154, %s155
      %p167 = scmp.eq.s32.totalorder %s19, 1
      %p168 = por %p166, %p167
      %p170 = scmp.ne.s32.totalorder %s155, %s169
      %p171 = scmp.eq.s32.totalorder %s19, 0
      %p172 = por %p170, %p171
      %s173 = ssub.s32 %s13, %s20
      %p174 = scmp.eq.s32.totalorder %s173, 0
      %s176 = sadd.s32 %s175, 1
      %s177 = scalar_select %p174, %s175, %s176
      %p180 = pneg %p174
      %p181 = scmp.eq.s32.totalorder %s13, 1
      %p182 = por %p180, %p181
      %p183 = scmp.ne.s32.totalorder %s175, %s178
      %p184 = scmp.eq.s32.totalorder %s13, 0
      %p185 = por %p183, %p184
      %p186 = scmp.ne.s32.totalorder %s175, %s178
      %p187 = scmp.eq.s32.totalorder %s18, 1
      %p188 = por %p186, %p187
      %p189 = scmp.ne.s32.totalorder %s178, %s179
      %p190 = scmp.eq.s32.totalorder %s18, 0
      %p191 = por %p189, %p190
      %p192 = scmp.ne.s32.totalorder %s178, %s179
      %p193 = scmp.eq.s32.totalorder %s19, 1
      %p194 = por %p192, %p193
      %p196 = scmp.ne.s32.totalorder %s179, %s195
      %p197 = scmp.eq.s32.totalorder %s19, 0
      %p198 = por %p196, %p197
      %p199 = scmp.le.s32.totalorder 1, %s13
      %p200 = scmp.lt.s32.totalorder %s13, 3
      %p201 = pnand %p199, %p200
      %p202 = pneg %p201
      // Predicated region
      $region9: #{tpu_custom_call.1} parent=5 // pred_check
        _
      $region10: #{tpu_custom_call.1} parent=5 // pred_check_branch
        %204 = sbr.rel (%p201) target = $region12
      $region11: #{tpu_custom_call.1} parent=5 // pred_region
        %s205 = ssub.s32 %s13, 1
        // Predicated region
        $region13: #{tpu_custom_call.1} parent=11 // pred_check
          %p206 = pneg %p60
        $region14: #{tpu_custom_call.1} parent=11 // pred_check_branch
          %208 = sbr.rel (%p206) target = $region16
        $region15: #{tpu_custom_call.1} parent=11 // pred_region
          _
        $region16: #{tpu_custom_call.1} parent=11 // pred_fallthru
          _
        // Predicated region
        $region17: #{tpu_custom_call.1} parent=11 // pred_check
          %p209 = pneg %p81
        $region18: #{tpu_custom_call.1} parent=11 // pred_check_branch
          %211 = sbr.rel (%p209) target = $region20
        $region19: #{tpu_custom_call.1} parent=11 // pred_region
          _
        $region20: #{tpu_custom_call.1} parent=11 // pred_fallthru
          _
        // Predicated region
        $region21: #{tpu_custom_call.1} parent=11 // pred_check
          %p212 = pneg %p102
        $region22: #{tpu_custom_call.1} parent=11 // pred_check_branch
          %214 = sbr.rel (%p212) target = $region24
        $region23: #{tpu_custom_call.1} parent=11 // pred_region
          _
        $region24: #{tpu_custom_call.1} parent=11 // pred_fallthru
          _
        // Predicated region
        $region25: #{tpu_custom_call.1} parent=11 // pred_check
          %p215 = pneg %p123
        $region26: #{tpu_custom_call.1} parent=11 // pred_check_branch
          %217 = sbr.rel (%p215) target = $region28
        $region27: #{tpu_custom_call.1} parent=11 // pred_region
          _
        $region28: #{tpu_custom_call.1} parent=11 // pred_fallthru
          _
        // Predicated region
        $region29: #{tpu_custom_call.1} parent=11 // pred_check
          %p218 = pneg %p144
        $region30: #{tpu_custom_call.1} parent=11 // pred_check_branch
          %220 = sbr.rel (%p218) target = $region32
        $region31: #{tpu_custom_call.1} parent=11 // pred_region
          _
        $region32: #{tpu_custom_call.1} parent=11 // pred_fallthru
          _
        // Predicated region
        $region33: #{tpu_custom_call.1} parent=11 // pred_check
          %p221 = pneg %p165
        $region34: #{tpu_custom_call.1} parent=11 // pred_check_branch
          %223 = sbr.rel (%p221) target = $region36
        $region35: #{tpu_custom_call.1} parent=11 // pred_region
          _
        $region36: #{tpu_custom_call.1} parent=11 // pred_fallthru
          _
      $region12: #{tpu_custom_call.1} parent=5 // pred_fallthru
        _
      %p224 = scmp.lt.s32.totalorder %s13, 2
      // Predicated region
      $region37: #{tpu_custom_call.1} parent=5 // pred_check
        %p225 = pneg %p224
      $region38: #{tpu_custom_call.1} parent=5 // pred_check_branch
        %227 = sbr.rel (%p225) target = $region40
      $region39: #{tpu_custom_call.1} parent=5 // pred_region
        // Predicated region
        $region41: #{tpu_custom_call.1} parent=39 // pred_check
          %p228 = pneg %p33
        $region42: #{tpu_custom_call.1} parent=39 // pred_check_branch
          %230 = sbr.rel (%p228) target = $region44
        $region43: #{tpu_custom_call.1} parent=39 // pred_region
          %s231 = smul.u32 4, %s13
          %s232 = ssub.s32 5, %s231
          %p233 = scmp.lt.s32.totalorder %s232, 4
          %s234 = scalar_select %p233, %s232, 4
          %s235 = smul.u32 128, %s234
          %p236 = scmp.lt.s32.totalorder %s231, 4
          %s237 = scalar_select %p236, %s231, 4
          %s238 = smul.addr %s237, 8
          %s239 = scalar_lea.vmem %s0, %s238
          %s240 = smul.u32 4, %s13
          %s241 = ssub.s32 5, %s240
          %p242 = scmp.lt.s32.totalorder %s241, 4
          %s243 = scalar_select %p242, %s241, 4
          %s244 = smul.u32 128, %s243
        $region44: #{tpu_custom_call.1} parent=39 // pred_fallthru
          _
      $region40: #{tpu_custom_call.1} parent=5 // pred_fallthru
        _
      %p245 = scmp.le.s32.totalorder 1, %s13
      %p246 = scmp.lt.s32.totalorder %s13, 3
      %p247 = pnand %p245, %p246
      %p248 = pneg %p247
      // Predicated region
      $region45: #{tpu_custom_call.1} parent=5 // pred_check
        _
      $region46: #{tpu_custom_call.1} parent=5 // pred_check_branch
        %250 = sbr.rel (%p247) target = $region48
      $region47: #{tpu_custom_call.1} parent=5 // pred_region
        %s251 = ssub.s32 %s13, 1
        %s252 = smul.u32 4, %s18
        %s253 = ssub.s32 5, %s252
        %p254 = scmp.lt.s32.totalorder %s253, 4
        %s255 = scalar_select %p254, %s253, 4
        %s256 = smul.u32 128, %s255
        %p257 = scmp.lt.s32.totalorder %s252, 4
        %s258 = scalar_select %p257, %s252, 4
        %s259 = smul.addr %s258, 8
        %s260 = scalar_lea.vmem %s0, %s259
        %p261 = pneg %p39
        %p262 = pneg %p36
        %p263 = pneg %p60
        %p264 = pneg %p57
        %p265 = pneg %p81
        %p266 = pneg %p78
        %p267 = pneg %p102
        %p268 = pneg %p99
        %p269 = pneg %p123
        %p270 = pneg %p120
        %p271 = pneg %p144
        %p272 = pneg %p141
        %p273 = pneg %p165
        %p274 = pneg %p162
        %p275 = pneg %p191
        %p276 = pneg %p188
        %s277 = sand.u32 %s178, 1
        %s278 = sand.u32 %s178, 1
        %s279 = smul.addr %s278, 32
        %s280 = scalar_lea.vmem [#allocation2], %s279
        %s281 = smul.u32 4, %s18
        %s282 = ssub.s32 5, %s281
        %p283 = scmp.lt.s32.totalorder %s282, 4
        %s284 = scalar_select %p283, %s282, 4
        %s285 = smul.u32 128, %s284
        %p286 = scmp.lt.s32.totalorder %s281, 4
        %s287 = scalar_select %p286, %s281, 4
        %s288 = smul.addr %s287, 8
        %s289 = scalar_lea.vmem %s0, %s288
        %s290 = smul.u32 4, %s18
        %s291 = ssub.s32 5, %s290
        %p292 = scmp.lt.s32.totalorder %s291, 4
        %s293 = scalar_select %p292, %s291, 4
        %s294 = smul.u32 128, %s293
        %s295 = smul.u32 4, %s18
        %s296 = ssub.s32 5, %s295
        %p297 = scmp.lt.s32.totalorder %s296, 4
        %s298 = scalar_select %p297, %s296, 4
        %s299 = smul.u32 128, %s298
        %v301 = vld [vmem:[%s289] sm:$0xff]
        %v302 = vld [vmem:[%s289 + $0x8] sm:$0xff]
        %v303 = vld [vmem:[%s289 + $0x10] sm:$0xff]
        %v304 = vld [vmem:[%s289 + $0x18] sm:$0xff]
        %v305 = vpack.c.bf16 %v302, %v301
        %v306 = vpack.c.bf16 %v304, %v303
        %v307 = vld [vmem:[%s1] sm:$0xf]
        %v308 = vld [vmem:[%s1 + $0x4] sm:$0xf]
        %v309 = vld [vmem:[%s1 + $0x8] sm:$0xf]
        %v310 = vld [vmem:[%s1 + $0xc] sm:$0xf]
        %v311 = vld [vmem:[%s2] sm:$0x1]
        %v313 = vlaneseq
        %v314 = vshrl.u32 %v313, 7
        %v315 = vsub.s32 0, %v314
        %v316 = vrot.slane %v311, %v315
        %v322 = vunpack.c.l.b16 %v307
        %v323 = vunpack.c.l.b16 %v308
        %v324 = vunpack.c.l.b16 %v309
        %v325 = vunpack.c.l.b16 %v310
        %v326 = vpack.c.b16 %v323, %v322
        %v327 = vpack.c.b16 %v325, %v324
        %vm330 = vcmask 261120
        %v332 = vsel %vm330, %v305, 0
        %v335 = vsel %vm330, %v306, 0
        %337 = vmatprep.subr.bf16.mxu0 0
        %338 = vmatpush1.bf16.msra.mxu0 %v326
        %339 = vmatprep.subr.bf16.mxu0 0
        %340 = vmatpush1.bf16.msra.mxu0 %v327
        %341 = vmatprep.subr.bf16.mxu0 0
        %342 = vmatpush1.bf16.msra.mxu0 0
        %343 = vmatprep.subr.bf16.mxu0 0
        %344 = vmatpush1.bf16.msra.mxu0 0
        %345 = vmatprep.subr.bf16.mxu0 0
        %346 = vmatpush1.bf16.msra.mxu0 0
        %347 = vmatprep.subr.bf16.mxu0 0
        %348 = vmatpush1.bf16.msra.mxu0 0
        %349 = vmatprep.subr.bf16.mxu0 0
        %350 = vmatpush1.bf16.msra.mxu0 0
        %351 = vmatprep.subr.bf16.mxu0 0
        %352 = vmatpush1.bf16.msra.mxu0 0
        %353 = vmatprep.subr.bf16.mxu0 0
        %354 = vmatpush1.bf16.msra.mxu0 0
        %355 = vmatprep.subr.bf16.mxu0 0
        %356 = vmatpush1.bf16.msra.mxu0 0
        %357 = vmatprep.subr.bf16.mxu0 0
        %358 = vmatpush1.bf16.msra.mxu0 0
        %359 = vmatprep.subr.bf16.mxu0 0
        %360 = vmatpush1.bf16.msra.mxu0 0
        %361 = vmatprep.subr.bf16.mxu0 0
        %362 = vmatpush1.bf16.msra.mxu0 0
        %363 = vmatprep.subr.bf16.mxu0 0
        %364 = vmatpush1.bf16.msra.mxu0 0
        %365 = vmatprep.subr.bf16.mxu0 0
        %366 = vmatpush1.bf16.msra.mxu0 0
        %367 = vmatprep.subr.bf16.mxu0 0
        %368 = vmatpush1.bf16.msra.mxu0 0
        %369 = vmatprep.mubr.bf16.mxu0 0
        %370 = vmatmul.mubr.bf16.gmra.mrb[0].mxu0 %v332
        %v371 = vpop.f32.mrb[0].mxu0
        %v372 = vadd.f32 %v316, %v371
        %v373 = vpop.f32.mrb[0].mxu0
        %v374 = vpop.f32.mrb[0].mxu0
        %v375 = vadd.f32 %v316, %v374
        %v376 = vpop.f32.mrb[0].mxu0
        %377 = vmatprep.mubr.bf16.mxu0 0
        %378 = vmatmul.mubr.bf16.gmra.mrb[0].mxu0 %v335
        %v379 = vpop.f32.mrb[0].mxu0
        %v380 = vadd.f32 %v316, %v379
        %v381 = vpop.f32.mrb[0].mxu0
        %v382 = vpop.f32.mrb[0].mxu0
        %v383 = vadd.f32 %v316, %v382
        %v384 = vpop.f32.mrb[0].mxu0
        %385 = vdwg.mxu0
        %v386 = vpack.c.bf16 %v375, %v372
        %v387 = vpack.c.bf16 %v383, %v380
        %v388 = vld [vmem:[%s3] sm:$0xf]
        %v389 = vld [vmem:[%s3 + $0x4] sm:$0xf]
        %v390 = vld [vmem:[%s3 + $0x8] sm:$0xf]
        %v391 = vld [vmem:[%s3 + $0xc] sm:$0xf]
        %v392 = vld [vmem:[%s3 + $0x10] sm:$0xf]
        %v393 = vld [vmem:[%s3 + $0x14] sm:$0xf]
        %v394 = vld [vmem:[%s3 + $0x18] sm:$0xf]
        %v395 = vld [vmem:[%s3 + $0x1c] sm:$0xf]
        %v396 = vld [vmem:[%s3 + $0x20] sm:$0xf]
        %v397 = vld [vmem:[%s3 + $0x24] sm:$0xf]
        %v398 = vld [vmem:[%s3 + $0x28] sm:$0xf]
        %v399 = vld [vmem:[%s3 + $0x2c] sm:$0xf]
        %v400 = vld [vmem:[%s3 + $0x30] sm:$0xf]
        %v401 = vld [vmem:[%s3 + $0x34] sm:$0xf]
        %v402 = vld [vmem:[%s3 + $0x38] sm:$0xf]
        %v403 = vld [vmem:[%s3 + $0x3c] sm:$0xf]
        %v404 = vld [vmem:[%s4] sm:$0x1]
        %v406 = vlaneseq
        %v407 = vshrl.u32 %v406, 7
        %v408 = vsub.s32 0, %v407
        %v409 = vrot.slane %v404, %v408
        %v427 = vunpack.c.l.b16 %v388
        %v428 = vunpack.c.l.b16 %v389
        %v429 = vunpack.c.l.b16 %v390
        %v430 = vunpack.c.l.b16 %v391
        %v431 = vunpack.c.l.b16 %v392
        %v432 = vunpack.c.l.b16 %v393
        %v433 = vunpack.c.l.b16 %v394
        %v434 = vunpack.c.l.b16 %v395
        %v435 = vunpack.c.l.b16 %v396
        %v436 = vunpack.c.l.b16 %v397
        %v437 = vunpack.c.l.b16 %v398
        %v438 = vunpack.c.l.b16 %v399
        %v439 = vunpack.c.l.b16 %v400
        %v440 = vunpack.c.l.b16 %v401
        %v441 = vunpack.c.l.b16 %v402
        %v442 = vunpack.c.l.b16 %v403
        %v443 = vpack.c.b16 %v428, %v427
        %v444 = vpack.c.b16 %v430, %v429
        %v445 = vpack.c.b16 %v432, %v431
        %v446 = vpack.c.b16 %v434, %v433
        %v447 = vpack.c.b16 %v436, %v435
        %v448 = vpack.c.b16 %v438, %v437
        %v449 = vpack.c.b16 %v440, %v439
        %v450 = vpack.c.b16 %v442, %v441
        %459 = vmatprep.subr.bf16.mxu0 0
        %460 = vmatpush1.bf16.msra.mxu0 %v443
        %461 = vmatprep.subr.bf16.mxu0 0
        %462 = vmatpush1.bf16.msra.mxu0 %v444
        %463 = vmatprep.subr.bf16.mxu0 0
        %464 = vmatpush1.bf16.msra.mxu0 %v445
        %465 = vmatprep.subr.bf16.mxu0 0
        %466 = vmatpush1.bf16.msra.mxu0 %v446
        %467 = vmatprep.subr.bf16.mxu0 0
        %468 = vmatpush1.bf16.msra.mxu0 %v447
        %469 = vmatprep.subr.bf16.mxu0 0
        %470 = vmatpush1.bf16.msra.mxu0 %v448
        %471 = vmatprep.subr.bf16.mxu0 0
        %472 = vmatpush1.bf16.msra.mxu0 %v449
        %473 = vmatprep.subr.bf16.mxu0 0
        %474 = vmatpush1.bf16.msra.mxu0 %v450
        %475 = vmatprep.subr.bf16.mxu0 0
        %476 = vmatpush1.bf16.msra.mxu0 0
        %477 = vmatprep.subr.bf16.mxu0 0
        %478 = vmatpush1.bf16.msra.mxu0 0
        %479 = vmatprep.subr.bf16.mxu0 0
        %480 = vmatpush1.bf16.msra.mxu0 0
        %481 = vmatprep.subr.bf16.mxu0 0
        %482 = vmatpush1.bf16.msra.mxu0 0
        %483 = vmatprep.subr.bf16.mxu0 0
        %484 = vmatpush1.bf16.msra.mxu0 0
        %485 = vmatprep.subr.bf16.mxu0 0
        %486 = vmatpush1.bf16.msra.mxu0 0
        %487 = vmatprep.subr.bf16.mxu0 0
        %488 = vmatpush1.bf16.msra.mxu0 0
        %489 = vmatprep.subr.bf16.mxu0 0
        %490 = vmatpush1.bf16.msra.mxu0 0
        %491 = vmatprep.mubr.bf16.mxu0 0
        %492 = vmatmul.mubr.bf16.gmra.mrb[0].mxu0 %v386
        %v493 = vpop.f32.mrb[0].mxu0
        %v494 = vadd.f32 %v409, %v493
        %v495 = vpop.f32.mrb[0].mxu0
        %v496 = vpop.f32.mrb[0].mxu0
        %v497 = vadd.f32 %v409, %v496
        %v498 = vpop.f32.mrb[0].mxu0
        %499 = vmatprep.mubr.bf16.mxu0 0
        %500 = vmatmul.mubr.bf16.gmra.mrb[0].mxu0 %v387
        %v501 = vpop.f32.mrb[0].mxu0
        %v502 = vadd.f32 %v409, %v501
        %v503 = vpop.f32.mrb[0].mxu0
        %v504 = vpop.f32.mrb[0].mxu0
        %v505 = vadd.f32 %v409, %v504
        %v506 = vpop.f32.mrb[0].mxu0
        %507 = vdwg.mxu0
        %v508 = vpack.c.bf16 %v497, %v494
        %v509 = vpack.c.bf16 %v505, %v502
        %v510 = vld [vmem:[%s5] sm:$0xf]
        %v511 = vld [vmem:[%s5 + $0x4] sm:$0xf]
        %v512 = vld [vmem:[%s5 + $0x8] sm:$0xf]
        %v513 = vld [vmem:[%s5 + $0xc] sm:$0xf]
        %v514 = vld [vmem:[%s5 + $0x10] sm:$0xf]
        %v515 = vld [vmem:[%s5 + $0x14] sm:$0xf]
        %v516 = vld [vmem:[%s5 + $0x18] sm:$0xf]
        %v517 = vld [vmem:[%s5 + $0x1c] sm:$0xf]
        %v518 = vld [vmem:[%s5 + $0x20] sm:$0xf]
        %v519 = vld [vmem:[%s5 + $0x24] sm:$0xf]
        %v520 = vld [vmem:[%s5 + $0x28] sm:$0xf]
        %v521 = vld [vmem:[%s5 + $0x2c] sm:$0xf]
        %v522 = vld [vmem:[%s5 + $0x30] sm:$0xf]
        %v523 = vld [vmem:[%s5 + $0x34] sm:$0xf]
        %v524 = vld [vmem:[%s5 + $0x38] sm:$0xf]
        %v525 = vld [vmem:[%s5 + $0x3c] sm:$0xf]
        %v526 = vld [vmem:[%s6] sm:$0x1]
        %v528 = vlaneseq
        %v529 = vshrl.u32 %v528, 7
        %v530 = vsub.s32 0, %v529
        %v531 = vrot.slane %v526, %v530
        %v549 = vunpack.c.l.b16 %v510
        %v550 = vunpack.c.l.b16 %v511
        %v551 = vunpack.c.l.b16 %v512
        %v552 = vunpack.c.l.b16 %v513
        %v553 = vunpack.c.l.b16 %v514
        %v554 = vunpack.c.l.b16 %v515
        %v555 = vunpack.c.l.b16 %v516
        %v556 = vunpack.c.l.b16 %v517
        %v557 = vunpack.c.l.b16 %v518
        %v558 = vunpack.c.l.b16 %v519
        %v559 = vunpack.c.l.b16 %v520
        %v560 = vunpack.c.l.b16 %v521
        %v561 = vunpack.c.l.b16 %v522
        %v562 = vunpack.c.l.b16 %v523
        %v563 = vunpack.c.l.b16 %v524
        %v564 = vunpack.c.l.b16 %v525
        %v565 = vpack.c.b16 %v550, %v549
        %v566 = vpack.c.b16 %v552, %v551
        %v567 = vpack.c.b16 %v554, %v553
        %v568 = vpack.c.b16 %v556, %v555
        %v569 = vpack.c.b16 %v558, %v557
        %v570 = vpack.c.b16 %v560, %v559
        %v571 = vpack.c.b16 %v562, %v561
        %v572 = vpack.c.b16 %v564, %v563
        %581 = vmatprep.subr.bf16.mxu0 0
        %582 = vmatpush1.bf16.msra.mxu0 %v565
        %583 = vmatprep.subr.bf16.mxu0 0
        %584 = vmatpush1.bf16.msra.mxu0 %v566
        %585 = vmatprep.subr.bf16.mxu0 0
        %586 = vmatpush1.bf16.msra.mxu0 %v567
        %587 = vmatprep.subr.bf16.mxu0 0
        %588 = vmatpush1.bf16.msra.mxu0 %v568
        %589 = vmatprep.subr.bf16.mxu0 0
        %590 = vmatpush1.bf16.msra.mxu0 %v569
        %591 = vmatprep.subr.bf16.mxu0 0
        %592 = vmatpush1.bf16.msra.mxu0 %v570
        %593 = vmatprep.subr.bf16.mxu0 0
        %594 = vmatpush1.bf16.msra.mxu0 %v571
        %595 = vmatprep.subr.bf16.mxu0 0
        %596 = vmatpush1.bf16.msra.mxu0 %v572
        %597 = vmatprep.subr.bf16.mxu0 0
        %598 = vmatpush1.bf16.msra.mxu0 0
        %599 = vmatprep.subr.bf16.mxu0 0
        %600 = vmatpush1.bf16.msra.mxu0 0
        %601 = vmatprep.subr.bf16.mxu0 0
        %602 = vmatpush1.bf16.msra.mxu0 0
        %603 = vmatprep.subr.bf16.mxu0 0
        %604 = vmatpush1.bf16.msra.mxu0 0
        %605 = vmatprep.subr.bf16.mxu0 0
        %606 = vmatpush1.bf16.msra.mxu0 0
        %607 = vmatprep.subr.bf16.mxu0 0
        %608 = vmatpush1.bf16.msra.mxu0 0
        %609 = vmatprep.subr.bf16.mxu0 0
        %610 = vmatpush1.bf16.msra.mxu0 0
        %611 = vmatprep.subr.bf16.mxu0 0
        %612 = vmatpush1.bf16.msra.mxu0 0
        %613 = vmatprep.mubr.bf16.mxu0 0
        %614 = vmatmul.mubr.bf16.gmra.mrb[0].mxu0 %v508
        %v615 = vpop.f32.mrb[0].mxu0
        %v616 = vadd.f32 %v531, %v615
        %v617 = vpop.f32.mrb[0].mxu0
        %v618 = vpop.f32.mrb[0].mxu0
        %v619 = vadd.f32 %v531, %v618
        %v620 = vpop.f32.mrb[0].mxu0
        %621 = vmatprep.mubr.bf16.mxu0 0
        %622 = vmatmul.mubr.bf16.gmra.mrb[0].mxu0 %v509
        %v623 = vpop.f32.mrb[0].mxu0
        %v624 = vadd.f32 %v531, %v623
        %v625 = vpop.f32.mrb[0].mxu0
        %v626 = vpop.f32.mrb[0].mxu0
        %v627 = vadd.f32 %v531, %v626
        %v628 = vpop.f32.mrb[0].mxu0
        %629 = vdwg.mxu0
        %vm630 = vcmp.ge.f32.partialorder %v616, 0.0
        %vm631 = vcmp.ge.f32.partialorder %v619, 0.0
        %vm632 = vcmp.ge.f32.partialorder %v624, 0.0
        %vm633 = vcmp.ge.f32.partialorder %v627, 0.0
        %v634 = vmul.f32 %v616, 0.22916667
        %v635 = vmul.f32 %v619, 0.22916667
        %v636 = vmul.f32 %v624, 0.22916667
        %v637 = vmul.f32 %v627, 0.22916667
        %v638 = vsel %vm630, %v616, %v634
        %v639 = vsel %vm631, %v619, %v635
        %v640 = vsel %vm632, %v624, %v636
        %v641 = vsel %vm633, %v627, %v637
        %vm642 = vcmask 130048
        %643 = vst.msk [vmem:[%s280] sm:$0xff] %vm642, %v638
        %644 = vst.msk [vmem:[%s280 + $0x8] sm:$0xff] %vm642, %v639
        %645 = vst.msk [vmem:[%s280 + $0x10] sm:$0xff] %vm642, %v640
        %646 = vst.msk [vmem:[%s280 + $0x18] sm:$0xff] %vm642, %v641
        %s647 = sand.u32 %s178, 1
        %s648 = sand.u32 %s178, 1
        %s649 = smul.addr %s648, 32
        %s650 = scalar_lea.vmem [#allocation2], %s649
        // Predicated region
        $region49: #{tpu_custom_call.1} parent=47 // pred_check
          %p651 = pneg %p188
        $region50: #{tpu_custom_call.1} parent=47 // pred_check_branch
          %653 = sbr.rel (%p651) target = $region52
        $region51: #{tpu_custom_call.1} parent=47 // pred_region
          %s654 = smul.u32 4, %s18
          %s655 = ssub.s32 5, %s654
          %p656 = scmp.lt.s32.totalorder %s655, 4
          %s657 = scalar_select %p656, %s655, 4
          %s658 = smul.u32 128, %s657
          %p659 = scmp.ne.s32.totalorder 0, %s658
          %s660 = smul.addr %s654, 8
          %s661 = scalar_lea.vmem %s7, %s660
          // Predicated region
          $region53: #{tpu_custom_call.1} parent=51 // pred_check
            %p662 = pneg %p659
          $region54: #{tpu_custom_call.1} parent=51 // pred_check_branch
            %664 = sbr.rel (%p662) target = $region56
          $region55: #{tpu_custom_call.1} parent=51 // pred_region
            // Predicated region
            $region57: #{tpu_custom_call.1} parent=55 // pred_check
              _
            $region58: #{tpu_custom_call.1} parent=55 // pred_check_branch
              %666 = sbr.rel (0) target = $region60
            $region59: #{tpu_custom_call.1} parent=55 // pred_region
              // Predicated region
              $region79: #{tpu_custom_call.1} parent=59 // pred_check
                _
              $region80: #{tpu_custom_call.1} parent=59 // pred_check_branch
                %721 = sbr.rel (0) target = $region82
              $region81: #{tpu_custom_call.1} parent=59 // pred_region
                %s722 = sshrl.u32 %s657, 2
                // While loop
                $region83: #{tpu_custom_call.1} parent=81 // loop_pre_header
                  _
                $region84: #{tpu_custom_call.1} parent=81 // loop_header
                  %s724 = sphi 0, %s726
                  %p725 = scmp.ge.s32.totalorder %s724, %s722
                  %s729 = sphi 0, %s742
                  %s730 = sphi %s650, %s745
                  %s731 = sphi %s661, %s746
                $region85: #{tpu_custom_call.1} parent=81 // loop_header_branch
                  %728 = sbr.rel (%p725) target = $region89
                $region86: #{tpu_custom_call.1} parent=81 // loop_body
                  %v732 = vld [vmem:[%s730] sm:$0xff]
                  %733 = vst [vmem:[%s731] sm:$0xff] %v732
                  %v734 = vld [vmem:[%s730 + $0x8] sm:$0xff]
                  %735 = vst [vmem:[%s731 + $0x8] sm:$0xff] %v734
                  %v736 = vld [vmem:[%s730 + $0x10] sm:$0xff]
                  %737 = vst [vmem:[%s731 + $0x10] sm:$0xff] %v736
                  %v738 = vld [vmem:[%s730 + $0x18] sm:$0xff]
                  %739 = vst [vmem:[%s731 + $0x18] sm:$0xff] %v738
                  %s740 = sadd.s32 1, %s729
                  %p741 = scmp.ge.s32.totalorder %s740, %s722
                  %s742 = scalar_select %p741, 0, %s740
                  %s743 = smul.u32 %s742, 32
                  %s744 = smul.u32 %s742, 32
                  %s745 = scalar_lea.vmem %s650, %s743 [#allocation2]
                  %s746 = scalar_lea.vmem %s661, %s744
                $region87: #{tpu_custom_call.1} parent=81 // loop_footer
                  %s726 = sadd.s32 %s724, 1
                $region88: #{tpu_custom_call.1} parent=81 // loop_footer_branch
                  %723 = sbr.rel target = $region84
                $region89: #{tpu_custom_call.1} parent=81 // loop_exit
                  _
                %s747 = sshrl.u32 %s657, 2
                %s748 = sand.u32 %s657, 3
                %s749 = smul.u32 %s747, 4
                %s750 = smul.u32 8, %s749
                %s751 = scalar_lea.vmem %s650, %s750 [#allocation2]
                %s752 = smul.u32 8, %s749
                %s753 = scalar_lea.vmem %s661, %s752
                // While loop
                $region90: #{tpu_custom_call.1} parent=81 // loop_pre_header
                  _
                $region91: #{tpu_custom_call.1} parent=81 // loop_header
                  %s755 = sphi 0, %s757
                  %p756 = scmp.ge.s32.totalorder %s755, %s748
                  %s760 = sphi 0, %s767
                  %s761 = sphi %s751, %s770
                  %s762 = sphi %s753, %s771
                $region92: #{tpu_custom_call.1} parent=81 // loop_header_branch
                  %759 = sbr.rel (%p756) target = $region96
                $region93: #{tpu_custom_call.1} parent=81 // loop_body
                  %v763 = vld [vmem:[%s761] sm:$0xff]
                  %764 = vst [vmem:[%s762] sm:$0xff] %v763
                  %s765 = sadd.s32 1, %s760
                  %p766 = scmp.ge.s32.totalorder %s765, %s748
                  %s767 = scalar_select %p766, 0, %s765
                  %s768 = smul.u32 %s767, 8
                  %s769 = smul.u32 %s767, 8
                  %s770 = scalar_lea.vmem %s751, %s768 [#allocation2]
                  %s771 = scalar_lea.vmem %s753, %s769
                $region94: #{tpu_custom_call.1} parent=81 // loop_footer
                  %s757 = sadd.s32 %s755, 1
                $region95: #{tpu_custom_call.1} parent=81 // loop_footer_branch
                  %754 = sbr.rel target = $region91
                $region96: #{tpu_custom_call.1} parent=81 // loop_exit
                  _
              $region82: #{tpu_custom_call.1} parent=59 // pred_fallthru
                _
              // Predicated region
              $region97: #{tpu_custom_call.1} parent=59 // pred_check
                _
              $region98: #{tpu_custom_call.1} parent=59 // pred_check_branch
                %773 = sbr.rel target = $region100
              $region99: #{tpu_custom_call.1} parent=59 // pred_region
                _
              $region100: #{tpu_custom_call.1} parent=59 // pred_fallthru
                _
            $region60: #{tpu_custom_call.1} parent=55 // pred_fallthru
              _
            // Predicated region
            $region61: #{tpu_custom_call.1} parent=55 // pred_check
              _
            $region62: #{tpu_custom_call.1} parent=55 // pred_check_branch
              %668 = sbr.rel target = $region64
            $region63: #{tpu_custom_call.1} parent=55 // pred_region
              %s670 = sshrl.u32 %s657, 2
              // While loop
              $region65: #{tpu_custom_call.1} parent=63 // loop_pre_header
                _
              $region66: #{tpu_custom_call.1} parent=63 // loop_header
                %s672 = sphi 0, %s674
                %p673 = scmp.ge.s32.totalorder %s672, %s670
                %s677 = sphi 0, %s690
                %s678 = sphi %s650, %s693
                %s679 = sphi %s661, %s694
              $region67: #{tpu_custom_call.1} parent=63 // loop_header_branch
                %676 = sbr.rel (%p673) target = $region71
              $region68: #{tpu_custom_call.1} parent=63 // loop_body
                %v680 = vld [vmem:[%s678] sm:$0xff]
                %681 = vst [vmem:[%s679] sm:$0xff] %v680
                %v682 = vld [vmem:[%s678 + $0x8] sm:$0xff]
                %683 = vst [vmem:[%s679 + $0x8] sm:$0xff] %v682
                %v684 = vld [vmem:[%s678 + $0x10] sm:$0xff]
                %685 = vst [vmem:[%s679 + $0x10] sm:$0xff] %v684
                %v686 = vld [vmem:[%s678 + $0x18] sm:$0xff]
                %687 = vst [vmem:[%s679 + $0x18] sm:$0xff] %v686
                %s688 = sadd.s32 1, %s677
                %p689 = scmp.ge.s32.totalorder %s688, %s670
                %s690 = scalar_select %p689, 0, %s688
                %s691 = smul.u32 %s690, 32
                %s692 = smul.u32 %s690, 32
                %s693 = scalar_lea.vmem %s650, %s691 [#allocation2]
                %s694 = scalar_lea.vmem %s661, %s692
              $region69: #{tpu_custom_call.1} parent=63 // loop_footer
                %s674 = sadd.s32 %s672, 1
              $region70: #{tpu_custom_call.1} parent=63 // loop_footer_branch
                %671 = sbr.rel target = $region66
              $region71: #{tpu_custom_call.1} parent=63 // loop_exit
                _
              %s695 = sshrl.u32 %s657, 2
              %s696 = sand.u32 %s657, 3
              %s697 = smul.u32 %s695, 4
              %s698 = smul.u32 8, %s697
              %s699 = scalar_lea.vmem %s650, %s698 [#allocation2]
              %s700 = smul.u32 8, %s697
              %s701 = scalar_lea.vmem %s661, %s700
              // While loop
              $region72: #{tpu_custom_call.1} parent=63 // loop_pre_header
                _
              $region73: #{tpu_custom_call.1} parent=63 // loop_header
                %s703 = sphi 0, %s705
                %p704 = scmp.ge.s32.totalorder %s703, %s696
                %s708 = sphi 0, %s715
                %s709 = sphi %s699, %s718
                %s710 = sphi %s701, %s719
              $region74: #{tpu_custom_call.1} parent=63 // loop_header_branch
                %707 = sbr.rel (%p704) target = $region78
              $region75: #{tpu_custom_call.1} parent=63 // loop_body
                %v711 = vld [vmem:[%s709] sm:$0xff]
                %712 = vst [vmem:[%s710] sm:$0xff] %v711
                %s713 = sadd.s32 1, %s708
                %p714 = scmp.ge.s32.totalorder %s713, %s696
                %s715 = scalar_select %p714, 0, %s713
                %s716 = smul.u32 %s715, 8
                %s717 = smul.u32 %s715, 8
                %s718 = scalar_lea.vmem %s699, %s716 [#allocation2]
                %s719 = scalar_lea.vmem %s701, %s717
              $region76: #{tpu_custom_call.1} parent=63 // loop_footer
                %s705 = sadd.s32 %s703, 1
              $region77: #{tpu_custom_call.1} parent=63 // loop_footer_branch
                %702 = sbr.rel target = $region73
              $region78: #{tpu_custom_call.1} parent=63 // loop_exit
                _
            $region64: #{tpu_custom_call.1} parent=55 // pred_fallthru
              _
          $region56: #{tpu_custom_call.1} parent=51 // pred_fallthru
            _
          %774 = vnop
        $region52: #{tpu_custom_call.1} parent=47 // pred_fallthru
          _
      $region48: #{tpu_custom_call.1} parent=5 // pred_fallthru
        _
      %p775 = scmp.le.s32.totalorder 2, %s13
      // Predicated region
      $region101: #{tpu_custom_call.1} parent=5 // pred_check
        %p776 = pneg %p775
      $region102: #{tpu_custom_call.1} parent=5 // pred_check_branch
        %778 = sbr.rel (%p776) target = $region104
      $region103: #{tpu_custom_call.1} parent=5 // pred_region
        %s779 = ssub.s32 %s13, 2
        // Predicated region
        $region105: #{tpu_custom_call.1} parent=103 // pred_check
          %p780 = pneg %p194
        $region106: #{tpu_custom_call.1} parent=103 // pred_check_branch
          %782 = sbr.rel (%p780) target = $region108
        $region107: #{tpu_custom_call.1} parent=103 // pred_region
          %s783 = sand.u32 %s179, 1
          %s784 = sand.u32 %s179, 1
          %s785 = smul.addr %s784, 32
          %s786 = scalar_lea.vmem [#allocation2], %s785
        $region108: #{tpu_custom_call.1} parent=103 // pred_fallthru
          _
      $region104: #{tpu_custom_call.1} parent=5 // pred_fallthru
        _
    $region6: #{tpu_custom_call.1} parent=1 // loop_footer
      %s17 = sadd.s32 1, %s13
    $region7: #{tpu_custom_call.1} parent=1 // loop_footer_branch
      %12 = sbr.rel target = $region3
    $region8: #{tpu_custom_call.1} parent=1 // loop_exit
      _

</llo_original>
